<compile_context>
chip_gen: v6e
topology: v6e:2x2x1
jax: 0.10.0
libtpu: 0.0.40
codegen_flags: <defaults>
</compile_context>

<pallas_src>
import math
from functools import partial

import jax
import jax.numpy as jnp
from jax.experimental import pallas as pl
from jax.experimental.pallas import tpu as pltpu


def _round_up(x: int, m: int) -> int:
    return ((x + m - 1) // m) * m


def _layernorm_store(acc, gamma_ref, beta_ref, out_ref, d_real: int, eps_eff: float):
    """LayerNorm of `acc` (f32, (TN, d_pad)) with the sqrt(d_model) scale folded
    into eps_eff.  Padded feature columns of lut/gamma/beta are zero, so the
    only correction needed is the exact (d_pad - d_real) * mean^2 term."""
    d_pad = acc.shape[-1]
    inv_d = 1.0 / float(d_real)
    mean = jnp.sum(acc, axis=-1, keepdims=True) * inv_d
    centered = acc - mean
    css = jnp.sum(centered * centered, axis=-1, keepdims=True)
    if d_pad != d_real:
        # padded cols contribute exactly mean^2 each to css; remove them.
        css = css - float(d_pad - d_real) * (mean * mean)
    var = css * inv_d
    inv = jax.lax.rsqrt(var + eps_eff)
    out_ref[...] = (centered * inv * gamma_ref[...] + beta_ref[...]).astype(out_ref.dtype)


# ---------------------------------------------------------------------------
# Path 1: small vocab -> table resident in VMEM, fused one-hot MXU gather.
# ---------------------------------------------------------------------------
def _onehot_kernel(idx_ref, lut_ref, gamma_ref, beta_ref, out_ref, *,
                   d_real: int, eps_eff: float):
    idx = idx_ref[...]                       # (TN, 3) int32: [token, role, turn]
    tn = idx.shape[0]
    v_pad = lut_ref.shape[0]
    cdtype = lut_ref.dtype

    # Single hoisted vocab iota; compares summed as int32 and cast to the MXU
    # dtype exactly once (duplicate indices correctly contribute 2x / 3x).
    vpos = jax.lax.broadcasted_iota(jnp.int32, (tn, v_pad), 1)
    onehot_i = ((vpos == idx[:, 0:1]).astype(jnp.int32)
                + (vpos == idx[:, 1:2]).astype(jnp.int32)
                + (vpos == idx[:, 2:3]).astype(jnp.int32))
    onehot = onehot_i.astype(cdtype)

    acc = jnp.dot(onehot, lut_ref[...], preferred_element_type=jnp.float32)
    _layernorm_store(acc, gamma_ref, beta_ref, out_ref, d_real, eps_eff)


# ---------------------------------------------------------------------------
# Path 2: large vocab -> lut stays in HBM, per-token DMA row gather with a
# scalar-prefetched (SMEM) index slab and a double-buffered gather buffer.
# ---------------------------------------------------------------------------
def _gather_kernel(idx_sref, lut_ref, gamma_ref, beta_ref, out_ref,
                   gbuf, acc_ref, sem, *, row_tile: int, d_real: int, eps_eff: float):
    base = pl.program_id(0) * row_tile

    def issue(r, slot):
        off = 3 * (base + r)
        for j in range(3):
            row = idx_sref[off + j]
            pltpu.make_async_copy(lut_ref.at[pl.ds(row, 1), :],
                                  gbuf.at[slot, j],
                                  sem.at[slot, j]).start()

    issue(0, 0)

    def body(r, carry):
        slot = r % 2
        # Wait for this row's 3 gathers (dummy src: only shape/sem matter).
        for j in range(3):
            pltpu.make_async_copy(lut_ref.at[pl.ds(0, 1), :],
                                  gbuf.at[slot, j],
                                  sem.at[slot, j]).wait()

        @pl.when(r + 1 < row_tile)
        def _():
            issue(r + 1, 1 - slot)

        g = gbuf[slot].astype(jnp.float32)            # (3, 1, d_pad)
        acc_ref[pl.ds(r, 1), :] = g[0] + g[1] + g[2]  # summed embedding row
        return carry

    jax.lax.fori_loop(0, row_tile, body, 0)

    _layernorm_store(acc_ref[...], gamma_ref, beta_ref, out_ref, d_real, eps_eff)


# ---------------------------------------------------------------------------
# Wrapper
# ---------------------------------------------------------------------------
def embeddings_forward(x, roles, turns, lut, gamma, beta, *,
                       eps: float = 1e-5,
                       row_tile: int = 512,
                       compute_dtype=None,
                       force_gather: bool = False,
                       resident_table_bytes: int = 8 * 1024 * 1024):
    """x, roles, turns: (B, S) int; lut: (V, D); gamma/beta: (D,).

    compute_dtype: dtype of the table / MXU operands (pass jnp.bfloat16 on
    v6e/v7x to halve table traffic; accumulation and LayerNorm stay f32).
    """
    B, S = x.shape
    V, D = lut.shape
    N = B * S

    if compute_dtype is None:
        compute_dtype = lut.dtype
    compute_dtype = jnp.dtype(compute_dtype)
    itemsize = compute_dtype.itemsize

    # ---- lane-dense feature dim: pad D up to a multiple of 128 -------------
    d_pad = max(128, _round_up(D, 128))

    # ---- row tiling (clamped so tiny problems don't over-pad) --------------
    row_tile = max(8, min(_round_up(row_tile, 8), _round_up(N, 8)))
    n_pad = _round_up(N, row_tile)
    grid_rows = n_pad // row_tile

    # ---- path selection -----------------------------------------------------
    v_pad = _round_up(V, 128)                       # one-hot lane dim / MXU K dim
    table_bytes = v_pad * d_pad * itemsize
    use_onehot = ((not force_gather) and (v_pad <= 4096)
                  and (table_bytes <= resident_table_bytes))

    # ---- operand packing -----------------------------------------------------
    idx = jnp.stack([x, roles, turns], axis=-1).reshape(N, 3).astype(jnp.int32)
    if n_pad != N:
        idx = jnp.pad(idx, ((0, n_pad - N), (0, 0)))      # padded rows -> index 0

    gamma2 = jnp.pad(gamma.astype(jnp.float32), (0, d_pad - D)).reshape(1, d_pad)
    beta2 = jnp.pad(beta.astype(jnp.float32), (0, d_pad - D)).reshape(1, d_pad)

    # Fold the sqrt(d_model) scale into LayerNorm's eps:
    #   LN(sqrt(D) * u, eps) == LN(u, eps / D)   (exact)
    eps_eff = float(eps) / float(D)

    if use_onehot:
        lut_c = jnp.pad(lut.astype(compute_dtype), ((0, v_pad - V), (0, d_pad - D)))

        footprint = (2 * row_tile * 3 * 4                      # idx tiles
                     + 2 * v_pad * d_pad * itemsize            # resident table
                     + 2 * row_tile * d_pad * 4                # output tiles
                     + row_tile * v_pad * (4 + itemsize)       # one-hot temporaries
                     + 2 * row_tile * d_pad * 4)               # f32 intermediates
        vmem_limit = int(min(40 * 2**20, max(16 * 2**20, 2 * footprint)))

        out = pl.pallas_call(
            partial(_onehot_kernel, d_real=D, eps_eff=eps_eff),
            out_shape=jax.ShapeDtypeStruct((n_pad, d_pad), jnp.float32),
            grid_spec=pltpu.PrefetchScalarGridSpec(
                num_scalar_prefetch=0,
                grid=(grid_rows,),
                in_specs=[
                    pl.BlockSpec((row_tile, 3), lambda i: (i, 0)),   # indices
                    pl.BlockSpec((v_pad, d_pad), lambda i: (0, 0)),  # resident lut
                    pl.BlockSpec((1, d_pad), lambda i: (0, 0)),      # gamma
                    pl.BlockSpec((1, d_pad), lambda i: (0, 0)),      # beta
                ],
                out_specs=pl.BlockSpec((row_tile, d_pad), lambda i: (i, 0)),
            ),
            compiler_params=pltpu.CompilerParams(
                dimension_semantics=("parallel",),
                vmem_limit_bytes=vmem_limit,
            ),
        )(idx, lut_c, gamma2, beta2)
    else:
        # HBM-resident table + per-token DMA row gather.
        # TODO(synk): for very large N the whole (3*N,) index slab is scalar-
        # prefetched into SMEM; beyond SMEM capacity this would need per-tile
        # index DMAs instead of a single prefetch.
        lut_c = lut.astype(compute_dtype)
        if d_pad != D:
            lut_c = jnp.pad(lut_c, ((0, 0), (0, d_pad - D)))
        idx_flat = idx.reshape(-1)                             # (3*n_pad,) int32

        footprint = (2 * 3 * d_pad * itemsize                  # gather buffers
                     + row_tile * d_pad * 4                    # f32 accumulator
                     + 2 * row_tile * d_pad * 4)               # output tiles
        vmem_limit = int(min(40 * 2**20, max(16 * 2**20, 2 * footprint)))

        out = pl.pallas_call(
            partial(_gather_kernel, row_tile=row_tile, d_real=D, eps_eff=eps_eff),
            out_shape=jax.ShapeDtypeStruct((n_pad, d_pad), jnp.float32),
            grid_spec=pltpu.PrefetchScalarGridSpec(
                num_scalar_prefetch=1,
                grid=(grid_rows,),
                in_specs=[
                    pl.BlockSpec(memory_space=pl.ANY),                  # lut in HBM
                    pl.BlockSpec((1, d_pad), lambda i, _idx: (0, 0)),   # gamma
                    pl.BlockSpec((1, d_pad), lambda i, _idx: (0, 0)),   # beta
                ],
                out_specs=pl.BlockSpec((row_tile, d_pad), lambda i, _idx: (i, 0)),
                scratch_shapes=[
                    pltpu.VMEM((2, 3, 1, d_pad), compute_dtype),  # double-buffered gather
                    pltpu.VMEM((row_tile, d_pad), jnp.float32),   # summed rows
                    pltpu.SemaphoreType.DMA((2, 3)),
                ],
            ),
            compiler_params=pltpu.CompilerParams(
                dimension_semantics=("parallel",),
                vmem_limit_bytes=vmem_limit,
            ),
        )(idx_flat, lut_c, gamma2, beta2)

    return out[:N, :D].reshape(B, S, D)


# ---------------------------------------------------------------------------
# Reference (pure JAX, mirrors the PyTorch forward)
# ---------------------------------------------------------------------------
def _reference(x, roles, turns, lut, gamma, beta, eps=1e-5):
    d = lut.shape[1]
    var = (lut[x] + lut[roles] + lut[turns]) * math.sqrt(d)
    mean = var.mean(-1, keepdims=True)
    v = ((var - mean) ** 2).mean(-1, keepdims=True)
    return (var - mean) / jnp.sqrt(v + eps) * gamma + beta


if __name__ == "__main__":
    # small shapes consistent with the module
    char, d_model = 64, 32            # vocab size, dimension_for_model
    num_of_roles, max_turns = 2, 16
    B, S = 2, 8

    key = jax.random.PRNGKey(0)
    k_lut, k_lr, k_lt, kx, kr, kt = jax.random.split(key, 6)

    # nn.Embedding ~ N(0,1); LayerNorm gamma=1, beta=0
    lut = jax.random.normal(k_lut, (char, d_model), dtype=jnp.float32)
    # lut_roles / lut_turns exist on the module but are unused by forward()
    # (it reuses self.lut for all three lookups) — kept here for parity.
    lut_roles = jax.random.normal(k_lr, (num_of_roles, d_model), dtype=jnp.float32)
    lut_turns = jax.random.normal(k_lt, (max_turns, d_model), dtype=jnp.float32)
    gamma = jnp.ones((d_model,), dtype=jnp.float32)
    beta = jnp.zeros((d_model,), dtype=jnp.float32)

    x = jax.random.randint(kx, (B, S), 0, char, dtype=jnp.int32)
    roles = jax.random.randint(kr, (B, S), 0, num_of_roles, dtype=jnp.int32)
    turns = jax.random.randint(kt, (B, S), 0, max_turns, dtype=jnp.int32)

    ref = _reference(x, roles, turns, lut, gamma, beta)

    # Path 1: resident one-hot matmul (auto-selected for this small table), f32.
    out = jax.block_until_ready(embeddings_forward(x, roles, turns, lut, gamma, beta))
    assert out.shape == (B, S, d_model)
    assert jnp.allclose(out, ref, atol=1e-4, rtol=1e-4), float(jnp.abs(out - ref).max())

    # Path 2: HBM-resident table + per-token DMA row gather (the production-V
    # path), forced here on the small table so it is exercised too.
    out_g = jax.block_until_ready(
        embeddings_forward(x, roles, turns, lut, gamma, beta, force_gather=True))
    assert jnp.allclose(out_g, ref, atol=1e-4, rtol=1e-4), float(jnp.abs(out_g - ref).max())

    # bf16 MXU-operand variant (v6e/v7x recommendation).  Compare against a
    # reference using the identically-quantized table, so the check stays tight.
    ref_bf = _reference(x, roles, turns,
                        lut.astype(jnp.bfloat16).astype(jnp.float32), gamma, beta)
    out_bf = jax.block_until_ready(
        embeddings_forward(x, roles, turns, lut, gamma, beta,
                           compute_dtype=jnp.bfloat16))
    assert jnp.allclose(out_bf, ref_bf, atol=2e-3, rtol=2e-3), \
        float(jnp.abs(out_bf - ref_bf).max())

    print("KERNEL_OK")
</pallas_src>

<mosaic_0001>
module attributes {stable_mosaic.version = 11 : i64} {
  func.func @_onehot_kernel(%arg0: i32, %arg1: memref<16x3xi32, #tpu.memory_space<vmem>>, %arg2: memref<128x128xf32, #tpu.memory_space<vmem>>, %arg3: memref<1x128xf32, #tpu.memory_space<vmem>>, %arg4: memref<1x128xf32, #tpu.memory_space<vmem>>, %arg5: memref<16x128xf32, #tpu.memory_space<vmem>>) attributes {dimension_semantics = [#tpu.dimension_semantics<parallel>], iteration_bounds = array<i64: 1>, scalar_prefetch = 0 : i64, scratch_operands = 0 : i64, tpu.core_type = #tpu.core_type<tc>, window_params = [{transform_indices = @transform_0, window_bounds = array<i64: 16, 3>}, {pipeline_mode = #tpu.pipeline_mode<synchronous>, transform_indices = @transform_1, window_bounds = array<i64: 128, 128>}, {pipeline_mode = #tpu.pipeline_mode<synchronous>, transform_indices = @transform_2, window_bounds = array<i64: 1, 128>}, {pipeline_mode = #tpu.pipeline_mode<synchronous>, transform_indices = @transform_3, window_bounds = array<i64: 1, 128>}, {transform_indices = @transform_4, window_bounds = array<i64: 16, 128>}]} {
    %c0 = arith.constant 0 : index
    %c0_0 = arith.constant 0 : index
    %0 = vector.load %arg1[%c0, %c0_0] : memref<16x3xi32, #tpu.memory_space<vmem>>, vector<16x3xi32>
    %1 = tpu.iota {dimensions = array<i32: 1>} : vector<16x128xi32>
    %2 = vector.extract_strided_slice %0 {offsets = [0, 0], sizes = [16, 1], strides = [1, 1]} : vector<16x3xi32> to vector<16x1xi32>
    %3 = vector.broadcast %2 : vector<16x1xi32> to vector<16x128xi32>
    %4 = arith.cmpi eq, %1, %3 : vector<16x128xi32>
    %5 = arith.extui %4 : vector<16x128xi1> to vector<16x128xi32>
    %6 = vector.extract_strided_slice %0 {offsets = [0, 1], sizes = [16, 1], strides = [1, 1]} : vector<16x3xi32> to vector<16x1xi32>
    %7 = vector.broadcast %6 : vector<16x1xi32> to vector<16x128xi32>
    %8 = arith.cmpi eq, %1, %7 : vector<16x128xi32>
    %9 = arith.extui %8 : vector<16x128xi1> to vector<16x128xi32>
    %10 = arith.addi %5, %9 : vector<16x128xi32>
    %11 = vector.extract_strided_slice %0 {offsets = [0, 2], sizes = [16, 1], strides = [1, 1]} : vector<16x3xi32> to vector<16x1xi32>
    %12 = vector.broadcast %11 : vector<16x1xi32> to vector<16x128xi32>
    %13 = arith.cmpi eq, %1, %12 : vector<16x128xi32>
    %14 = arith.extui %13 : vector<16x128xi1> to vector<16x128xi32>
    %15 = arith.addi %10, %14 : vector<16x128xi32>
    %16 = arith.sitofp %15 : vector<16x128xi32> to vector<16x128xf32>
    %c0_1 = arith.constant 0 : index
    %c0_2 = arith.constant 0 : index
    %17 = vector.load %arg2[%c0_1, %c0_2] : memref<128x128xf32, #tpu.memory_space<vmem>>, vector<128x128xf32>
    %cst = arith.constant dense<0.000000e+00> : vector<16x128xf32>
    %18 = tpu.matmul %16, %17, %cst {dimension_numbers = #tpu.dot_dimension_numbers<[1], [0], [0], [1], [0, 0, 1, 1], [], []>} : vector<16x128xf32>, vector<128x128xf32>, vector<16x128xf32> -> vector<16x128xf32>
    %cst_3 = arith.constant dense<0.000000e+00> : vector<16xf32>
    %19 = vector.multi_reduction <add>, %18, %cst_3 [1] : vector<16x128xf32> to vector<16xf32>
    %20 = vector.shape_cast %19 : vector<16xf32> to vector<16x1xf32>
    %cst_4 = arith.constant 3.125000e-02 : f32
    %21 = vector.broadcast %cst_4 : f32 to vector<16x1xf32>
    %22 = arith.mulf %20, %21 : vector<16x1xf32>
    %23 = vector.broadcast %22 : vector<16x1xf32> to vector<16x128xf32>
    %24 = arith.subf %18, %23 : vector<16x128xf32>
    %25 = arith.mulf %24, %24 : vector<16x128xf32>
    %cst_5 = arith.constant dense<0.000000e+00> : vector<16xf32>
    %26 = vector.multi_reduction <add>, %25, %cst_5 [1] : vector<16x128xf32> to vector<16xf32>
    %27 = vector.shape_cast %26 : vector<16xf32> to vector<16x1xf32>
    %28 = arith.mulf %22, %22 : vector<16x1xf32>
    %cst_6 = arith.constant 9.600000e+01 : f32
    %29 = vector.broadcast %cst_6 : f32 to vector<16x1xf32>
    %30 = arith.mulf %29, %28 : vector<16x1xf32>
    %31 = arith.subf %27, %30 : vector<16x1xf32>
    %cst_7 = arith.constant 3.125000e-02 : f32
    %32 = vector.broadcast %cst_7 : f32 to vector<16x1xf32>
    %33 = arith.mulf %31, %32 : vector<16x1xf32>
    %cst_8 = arith.constant 3.125000e-07 : f32
    %34 = vector.broadcast %cst_8 : f32 to vector<16x1xf32>
    %35 = arith.addf %33, %34 : vector<16x1xf32>
    %36 = math.rsqrt %35 : vector<16x1xf32>
    %37 = vector.broadcast %36 : vector<16x1xf32> to vector<16x128xf32>
    %38 = arith.mulf %24, %37 : vector<16x128xf32>
    %c0_9 = arith.constant 0 : index
    %c0_10 = arith.constant 0 : index
    %39 = vector.load %arg3[%c0_9, %c0_10] : memref<1x128xf32, #tpu.memory_space<vmem>>, vector<1x128xf32>
    %40 = vector.broadcast %39 : vector<1x128xf32> to vector<16x128xf32>
    %41 = arith.mulf %38, %40 : vector<16x128xf32>
    %c0_11 = arith.constant 0 : index
    %c0_12 = arith.constant 0 : index
    %42 = vector.load %arg4[%c0_11, %c0_12] : memref<1x128xf32, #tpu.memory_space<vmem>>, vector<1x128xf32>
    %43 = vector.broadcast %42 : vector<1x128xf32> to vector<16x128xf32>
    %44 = arith.addf %41, %43 : vector<16x128xf32>
    %c0_13 = arith.constant 0 : index
    %c0_14 = arith.constant 0 : index
    %45 = vector.load %arg5[%c0_13, %c0_14] : memref<16x128xf32, #tpu.memory_space<vmem>>, vector<16x128xf32>
    tpu.vector_store %arg5[%c0_13, %c0_14], %44 {strides = array<i32>} : memref<16x128xf32, #tpu.memory_space<vmem>>, vector<16x128xf32>,
    return
  }
  func.func @transform_0(%arg0: i32) -> (i32, i32) {
    %c0_i32 = arith.constant 0 : i32
    %c0_i32_0 = arith.constant 0 : i32
    return %arg0, %c0_i32 : i32, i32
  }
  func.func @transform_1(%arg0: i32) -> (i32, i32) {
    %c0_i32 = arith.constant 0 : i32
    %c0_i32_0 = arith.constant 0 : i32
    %c0_i32_1 = arith.constant 0 : i32
    return %c0_i32, %c0_i32_0 : i32, i32
  }
  func.func @transform_2(%arg0: i32) -> (i32, i32) {
    %c0_i32 = arith.constant 0 : i32
    %c0_i32_0 = arith.constant 0 : i32
    %c0_i32_1 = arith.constant 0 : i32
    return %c0_i32, %c0_i32_0 : i32, i32
  }
  func.func @transform_3(%arg0: i32) -> (i32, i32) {
    %c0_i32 = arith.constant 0 : i32
    %c0_i32_0 = arith.constant 0 : i32
    %c0_i32_1 = arith.constant 0 : i32
    return %c0_i32, %c0_i32_0 : i32, i32
  }
  func.func @transform_4(%arg0: i32) -> (i32, i32) {
    %c0_i32 = arith.constant 0 : i32
    %c0_i32_0 = arith.constant 0 : i32
    return %arg0, %c0_i32 : i32, i32
  }
}

</mosaic_0001>

<llo_original>
// kernel: tpu_custom_call.1
$region0: #{tpu_custom_call.1}
  #allocation0 [shape = 'u32[]', space=smem, size = 0x4, offset = 0x4, fixed_abs, tag = 'smem constant byte address 0x4 - core index']
  #allocation1 [shape = 'u32[144,128]{1,0:T(1,128)}', space=vmem, size = 0x12000, scoped, tag = 'internal scratch']
  %s0 = inlined_call_operand.vmem [shape: s32[16,3], index: 0, kind: input, shape index: {}]
  %s1 = inlined_call_operand.hbm [shape: f32[128,128], index: 1, kind: input, shape index: {}]
  %s2 = inlined_call_operand.vmem [shape: f32[1,128], index: 2, kind: input, shape index: {}]
  %s3 = inlined_call_operand.vmem [shape: f32[1,128], index: 3, kind: input, shape index: {}]
  %s4 = inlined_call_operand.hbm [shape: f32[16,128], index: 4, kind: output, shape index: {}]
  %s5 = sld [smem:[#allocation0]]
  $region30: #{tpu_custom_call.1} parent=0
    _
  %s7 = ssub.s32 1, %s5
  %s8 = scalar_select 0, %s7, %s5
  $region1: #{tpu_custom_call.1} parent=0
    #allocation2 [shape = 'u8[65536]{0}', space=vmem, size = 0x10000, scoped, tag = 'input window, operand 1, single buffered']
    #allocation3 [shape = 's32[1]{0}', space=sflag, size = 0x4, scoped, tag = 'scoped memory for tpu_custom_call.1']
    #allocation4 [shape = 's32[1]{0}', space=sflag, size = 0x4, scoped, tag = 'scoped memory for tpu_custom_call.1']
    #allocation5 [shape = 'u8[8192]{0}', space=vmem, size = 0x2000, scoped, tag = 'output window, operand 0, single buffered']
    %9 = vsyncpa [#allocation3], 0
    %10 = vsyncpa [#allocation4], 0
    // Predicated region
    $region2: #{tpu_custom_call.1} parent=1 // pred_check
      _
    $region3: #{tpu_custom_call.1} parent=1 // pred_check_branch
      %12 = sbr.rel (0) target = $region5
    $region4: #{tpu_custom_call.1} parent=1 // pred_region
      _
    $region5: #{tpu_custom_call.1} parent=1 // pred_fallthru
      _
    // Predicated region
    $region6: #{tpu_custom_call.1} parent=1 // pred_check
      _
    $region7: #{tpu_custom_call.1} parent=1 // pred_check_branch
      %14 = sbr.rel (0) target = $region9
    $region8: #{tpu_custom_call.1} parent=1 // pred_region
      %s16 = ssub.s32 2048, 2048
      %17 = vsyncadd [#allocation3], %s16
      %s18 = sshll.u32 [#allocation2], 4
      %s19 = int_to_ptr.vmem [resolvable:$true] %s18
      %24 = dma.hbm_to_vmem [thread:$0]  %s1, 2048, %s19, [#allocation3], 128, 128, 8
    $region9: #{tpu_custom_call.1} parent=1 // pred_fallthru
      _
    // Predicated region
    $region10: #{tpu_custom_call.1} parent=1 // pred_check
      _
    $region11: #{tpu_custom_call.1} parent=1 // pred_check_branch
      %26 = sbr.rel (0) target = $region13
    $region12: #{tpu_custom_call.1} parent=1 // pred_region
      _
    $region13: #{tpu_custom_call.1} parent=1 // pred_fallthru
      _
    // Predicated region
    $region14: #{tpu_custom_call.1} parent=1 // pred_check
      _
    $region15: #{tpu_custom_call.1} parent=1 // pred_check_branch
      %28 = sbr.rel (0) target = $region17
    $region16: #{tpu_custom_call.1} parent=1 // pred_region
      _
    $region17: #{tpu_custom_call.1} parent=1 // pred_fallthru
      _
    // Predicated region
    $region18: #{tpu_custom_call.1} parent=1 // pred_check
      _
    $region19: #{tpu_custom_call.1} parent=1 // pred_check_branch
      %30 = sbr.rel (0) target = $region21
    $region20: #{tpu_custom_call.1} parent=1 // pred_region
      %31 = dma.done [#allocation3], 2048
    $region21: #{tpu_custom_call.1} parent=1 // pred_fallthru
      _
    %v32 = vld [vmem:[%s0] sm:$0xff]
    %v33 = vld [vmem:[%s0 + $0x8] sm:$0xff]
    %v34 = vlaneseq
    %v35 = vand.u32 %v34, 127
    %36 = vset.pattern.permute.xlu0 0
    %37 = vperm.xlu0 %36, %v32
    %v38 = vpop.permute.xlu0 %37
    %39 = vset.pattern.permute.xlu0 0
    %40 = vperm.xlu0 %39, %v33
    %v41 = vpop.permute.xlu0 %40
    %vm42 = vcmp.eq.s32.totalorder %v35, %v38
    %vm43 = vcmp.eq.s32.totalorder %v35, %v41
    %v44 = vsel %vm42, 1, 0
    %v45 = vsel %vm43, 1, 0
    %46 = vset.pattern.permute.xlu0 1
    %47 = vperm.xlu0 %46, %v32
    %v48 = vpop.permute.xlu0 %47
    %49 = vset.pattern.permute.xlu0 1
    %50 = vperm.xlu0 %49, %v33
    %v51 = vpop.permute.xlu0 %50
    %vm52 = vcmp.eq.s32.totalorder %v35, %v48
    %vm53 = vcmp.eq.s32.totalorder %v35, %v51
    %v54 = vsel %vm52, 1, 0
    %v55 = vsel %vm53, 1, 0
    %v56 = vadd.s32 %v44, %v54
    %v57 = vadd.s32 %v45, %v55
    %58 = vset.pattern.permute.xlu0 2
    %59 = vperm.xlu0 %58, %v32
    %v60 = vpop.permute.xlu0 %59
    %61 = vset.pattern.permute.xlu0 2
    %62 = vperm.xlu0 %61, %v33
    %v63 = vpop.permute.xlu0 %62
    %vm64 = vcmp.eq.s32.totalorder %v35, %v60
    %vm65 = vcmp.eq.s32.totalorder %v35, %v63
    %v66 = vsel %vm64, 1, 0
    %v67 = vsel %vm65, 1, 0
    %v68 = vadd.s32 %v56, %v66
    %v69 = vadd.s32 %v57, %v67
    %v70 = vcvt.s32.f32 %v68
    %v71 = vcvt.s32.f32 %v69
    %v72 = vld [vmem:[#allocation2] sm:$0xff]
    %v73 = vld [vmem:[#allocation2 + $0x8] sm:$0xff]
    %v74 = vld [vmem:[#allocation2 + $0x10] sm:$0xff]
    %v75 = vld [vmem:[#allocation2 + $0x18] sm:$0xff]
    %v76 = vld [vmem:[#allocation2 + $0x20] sm:$0xff]
    %v77 = vld [vmem:[#allocation2 + $0x28] sm:$0xff]
    %v78 = vld [vmem:[#allocation2 + $0x30] sm:$0xff]
    %v79 = vld [vmem:[#allocation2 + $0x38] sm:$0xff]
    %v80 = vld [vmem:[#allocation2 + $0x40] sm:$0xff]
    %v81 = vld [vmem:[#allocation2 + $0x48] sm:$0xff]
    %v82 = vld [vmem:[#allocation2 + $0x50] sm:$0xff]
    %v83 = vld [vmem:[#allocation2 + $0x58] sm:$0xff]
    %v84 = vld [vmem:[#allocation2 + $0x60] sm:$0xff]
    %v85 = vld [vmem:[#allocation2 + $0x68] sm:$0xff]
    %v86 = vld [vmem:[#allocation2 + $0x70] sm:$0xff]
    %v87 = vld [vmem:[#allocation2 + $0x78] sm:$0xff]
    %88 = vmatprep.subr.mxu0 0.0
    %89 = vmatpush1.msra.mxu0 %v87
    %90 = vmatprep.subr.mxu0 0.0
    %91 = vmatpush1.msra.mxu0 %v86
    %92 = vmatprep.subr.mxu0 0.0
    %93 = vmatpush1.msra.mxu0 %v85
    %94 = vmatprep.subr.mxu0 0.0
    %95 = vmatpush1.msra.mxu0 %v84
    %96 = vmatprep.subr.mxu0 0.0
    %97 = vmatpush1.msra.mxu0 %v83
    %98 = vmatprep.subr.mxu0 0.0
    %99 = vmatpush1.msra.mxu0 %v82
    %100 = vmatprep.subr.mxu0 0.0
    %101 = vmatpush1.msra.mxu0 %v81
    %102 = vmatprep.subr.mxu0 0.0
    %103 = vmatpush1.msra.mxu0 %v80
    %104 = vmatprep.subr.mxu0 0.0
    %105 = vmatpush1.msra.mxu0 %v79
    %106 = vmatprep.subr.mxu0 0.0
    %107 = vmatpush1.msra.mxu0 %v78
    %108 = vmatprep.subr.mxu0 0.0
    %109 = vmatpush1.msra.mxu0 %v77
    %110 = vmatprep.subr.mxu0 0.0
    %111 = vmatpush1.msra.mxu0 %v76
    %112 = vmatprep.subr.mxu0 0.0
    %113 = vmatpush1.msra.mxu0 %v75
    %114 = vmatprep.subr.mxu0 0.0
    %115 = vmatpush1.msra.mxu0 %v74
    %116 = vmatprep.subr.mxu0 0.0
    %117 = vmatpush1.msra.mxu0 %v73
    %118 = vmatprep.subr.mxu0 0.0
    %119 = vmatpush1.msra.mxu0 %v72
    %120 = vmatprep.subr.mxu0 0.0
    %121 = vmatpush2.msra.mxu0 0.0
    %122 = vmatprep.subr.mxu0 0.0
    %123 = vmatpush2.msra.mxu0 0.0
    %124 = vmatprep.subr.mxu0 0.0
    %125 = vmatpush2.msra.mxu0 0.0
    %126 = vmatprep.subr.mxu0 0.0
    %127 = vmatpush2.msra.mxu0 0.0
    %128 = vmatprep.subr.mxu0 0.0
    %129 = vmatpush2.msra.mxu0 0.0
    %130 = vmatprep.subr.mxu0 0.0
    %131 = vmatpush2.msra.mxu0 0.0
    %132 = vmatprep.subr.mxu0 0.0
    %133 = vmatpush2.msra.mxu0 0.0
    %134 = vmatprep.subr.mxu0 0.0
    %135 = vmatpush2.msra.mxu0 0.0
    %136 = vmatprep.subr.mxu0 0.0
    %137 = vmatpush2.msra.mxu0 0.0
    %138 = vmatprep.subr.mxu0 0.0
    %139 = vmatpush2.msra.mxu0 0.0
    %140 = vmatprep.subr.mxu0 0.0
    %141 = vmatpush2.msra.mxu0 0.0
    %142 = vmatprep.subr.mxu0 0.0
    %143 = vmatpush2.msra.mxu0 0.0
    %144 = vmatprep.subr.mxu0 0.0
    %145 = vmatpush2.msra.mxu0 0.0
    %146 = vmatprep.subr.mxu0 0.0
    %147 = vmatpush2.msra.mxu0 0.0
    %148 = vmatprep.subr.mxu0 0.0
    %149 = vmatpush2.msra.mxu0 0.0
    %150 = vmatprep.subr.mxu0 0.0
    %151 = vmatpush2.msra.mxu0 0.0
    %152 = vmatprep.mubr.f32.mxu0 0.0
    %153 = vmatmul.mubr.f32.gmra.mxu0 %v70
    %v154 = vpop.f32.mrf.mxu0
    %v155 = vadd.f32 0.0, %v154
    %v156 = vpop.f32.mrf.mxu0
    %157 = vmatprep.mubr.f32.mxu0 0.0
    %158 = vmatmul.mubr.f32.gmra.mxu0 %v71
    %v159 = vpop.f32.mrf.mxu0
    %v160 = vadd.f32 0.0, %v159
    %v161 = vpop.f32.mrf.mxu0
    %162 = vdwg.mxu0
    %163 = vadd.xlane.f32.xlu0 %v155
    %v164 = vpop.xlane.xlu0 %163
    %165 = vadd.xlane.f32.xlu0 %v160
    %v166 = vpop.xlane.xlu0 %165
    %v167 = vmul.f32 %v164, 0.03125
    %v168 = vmul.f32 %v166, 0.03125
    %v169 = vsub.f32 %v155, %v167
    %v170 = vsub.f32 %v160, %v168
    %v171 = vmul.f32 %v169, %v169
    %v172 = vmul.f32 %v170, %v170
    %173 = vadd.xlane.f32.xlu0 %v171
    %v174 = vpop.xlane.xlu0 %173
    %175 = vadd.xlane.f32.xlu0 %v172
    %v176 = vpop.xlane.xlu0 %175
    %v177 = vmul.f32 %v167, %v167
    %v178 = vmul.f32 %v168, %v168
    %v179 = vmul.f32 %v177, 96.0
    %v180 = vmul.f32 %v178, 96.0
    %v181 = vsub.f32 %v174, %v179
    %v182 = vsub.f32 %v176, %v180
    %v183 = vmul.f32 %v181, 0.03125
    %v184 = vmul.f32 %v182, 0.03125
    %v185 = vadd.f32 %v183, 3.125e-07
    %v186 = vadd.f32 %v184, 3.125e-07
    %v187 = vrsqrt.pop %v185
    %v188 = vrsqrt.pop %v186
    %v189 = vmul.f32 %v169, %v187
    %v190 = vmul.f32 %v170, %v188
    %v191 = vld [vmem:[%s2] sm:$0x1]
    %v193 = vlaneseq
    %v194 = vshrl.u32 %v193, 7
    %v195 = vsub.s32 0, %v194
    %v196 = vrot.slane %v191, %v195
    %v198 = vmul.f32 %v189, %v196
    %v199 = vmul.f32 %v190, %v196
    %v200 = vld [vmem:[%s3] sm:$0x1]
    %v202 = vlaneseq
    %v203 = vshrl.u32 %v202, 7
    %v204 = vsub.s32 0, %v203
    %v205 = vrot.slane %v200, %v204
    %v207 = vadd.f32 %v198, %v205
    %v208 = vadd.f32 %v199, %v205
    %209 = vst [vmem:[#allocation5] sm:$0xff] %v207
    %210 = vst [vmem:[#allocation5 + $0x8] sm:$0xff] %v208
    // Predicated region
    $region22: #{tpu_custom_call.1} parent=1 // pred_check
      _
    $region23: #{tpu_custom_call.1} parent=1 // pred_check_branch
      %212 = sbr.rel (0) target = $region25
    $region24: #{tpu_custom_call.1} parent=1 // pred_region
      %s214 = ssub.s32 256, 256
      %215 = vsyncadd [#allocation4], %s214
      %s216 = sshll.u32 [#allocation5], 4
      %s217 = int_to_ptr.vmem [resolvable:$true] %s216
      %222 = dma.vmem_to_hbm [thread:$0]  %s217, 256, %s4, [#allocation4], 128, 128, 8
    $region25: #{tpu_custom_call.1} parent=1 // pred_fallthru
      _
    // Predicated region
    $region26: #{tpu_custom_call.1} parent=1 // pred_check
      _
    $region27: #{tpu_custom_call.1} parent=1 // pred_check_branch
      %224 = sbr.rel (0) target = $region29
    $region28: #{tpu_custom_call.1} parent=1 // pred_region
      %225 = dma.done [#allocation4], 256
    $region29: #{tpu_custom_call.1} parent=1 // pred_fallthru
      _
    %226 = vsyncpa [#allocation3], 1
    %227 = vsyncpa [#allocation4], 1

</llo_original>
